<compile_context>
chip_gen: v7x
topology: tpu7x:2x2x1
jax: 0.10.0
libtpu: 0.0.40
codegen_flags: <defaults>
</compile_context>

<pallas_src>
import functools

import jax
import jax.numpy as jnp
from jax import lax
from jax.experimental import pallas as pl
from jax.experimental.pallas import tpu as pltpu

LANE = 128


def _cdiv(a, b):
    return -(-a // b)


def _round_up(a, b):
    return _cdiv(a, b) * b


def _dice_sums_kernel(p_ref, l_ref, inter_ref, m1_ref, m2_ref, *,
                      two_channel, rows_valid, rt, steps, needs_mask):
    # grid = (cores, steps); axis 1 is the accumulation loop, outputs are
    # per-core resident (1, COLS) float32 accumulators.
    c = pl.program_id(0)
    s = pl.program_id(1)

    @pl.when(s == 0)
    def _():
        inter_ref[...] = jnp.zeros_like(inter_ref)
        m1_ref[...] = jnp.zeros_like(m1_ref)
        m2_ref[...] = jnp.zeros_like(m2_ref)

    # Slice the ref per channel: never materialize the whole (B,C,rt,COLS)
    # tile as one f32 temporary (matters for bf16/int8 inputs).
    if two_channel:
        p0 = p_ref[:, 0, :, :].astype(jnp.float32)          # (B, rt, COLS)
        p1 = p_ref[:, 1, :, :].astype(jnp.float32)
        # softmax([p0, p1])[0] == 1 / (1 + exp(p1 - p0)); exp overflow -> inf
        # -> 0, so this is numerically safe.
        m1 = 1.0 / (1.0 + jnp.exp(p1 - p0))
    else:
        m1 = p_ref[:, 0, :, :].astype(jnp.float32)           # (B, rt, COLS)

    m2 = l_ref[...].astype(jnp.float32)                      # (B, rt, COLS)

    # Batch reduction first: pure VALU vreg adds.
    inter_b = jnp.sum(m1 * m2, axis=0)                       # (rt, COLS)
    m1_b = jnp.sum(m1, axis=0)
    m2_b = jnp.sum(m2, axis=0)

    if needs_mask:
        # Rows at/after rows_valid are block padding (undefined data) or
        # belong to a clamped out-of-range block: zero them.  NaN/Inf garbage
        # cannot leak because jnp.where is a select.
        base = (c * steps + s) * rt
        row_ids = base + lax.broadcasted_iota(jnp.int32, (rt, 1), 0)
        valid = row_ids < rows_valid                          # (rt, 1)
        zeros = jnp.zeros_like(inter_b)
        inter_b = jnp.where(valid, inter_b, zeros)
        m1_b = jnp.where(valid, m1_b, zeros)
        m2_b = jnp.where(valid, m2_b, zeros)

    inter_ref[...] += jnp.sum(inter_b, axis=0, keepdims=True)  # (1, COLS)
    m1_ref[...] += jnp.sum(m1_b, axis=0, keepdims=True)
    m2_ref[...] += jnp.sum(m2_b, axis=0, keepdims=True)


def binary_dice_loss(preds, labels, alpha=None, num_classes=1,
                     size_average=True, *, block_rows=None, cores=1):
    """Matches BinaryDiceLoss.forward: preds [B,2,H,W] or [B,1,H,W],
    labels [B,H,W] or [B,1,H,W].  Returns a float32 scalar.

    block_rows / cores are tuning overrides (rows per grid step; number of
    parallel super-chunks — use cores=2 on v7x megacore, leave 1 on v5e/v6e).
    """
    B, C, H, W = preds.shape
    assert C in (1, 2)
    N = H * W

    # self.alpha setup, exactly as in the module __init__.
    if alpha is None:
        weight = jnp.ones((num_classes,), jnp.float32)
    elif isinstance(alpha, (list, tuple)):
        assert len(alpha) == num_classes
        weight = jnp.asarray(alpha, jnp.float32)
    else:
        assert alpha < 1
        weight = jnp.concatenate(
            [jnp.full((1,), alpha, jnp.float32),
             jnp.full((num_classes - 1,), 1.0 - alpha, jnp.float32)])

    # ---- Layout: free row-major reshapes only; never pad / slice-copy. ----
    if N % LANE == 0:
        ROWS, COLS = N // LANE, LANE        # lane-dense (..., R, 128) view
    else:
        ROWS, COLS = H, W                   # native view; W is a full dim
    p = preds.reshape(B, C, ROWS, COLS)
    lab = labels.reshape(B, ROWS, COLS)      # accepts (B,H,W) and (B,1,H,W)

    p_item = jnp.dtype(preds.dtype).itemsize
    l_item = jnp.dtype(labels.dtype).itemsize
    # Sublane multiple of a partial row-block: 8/16/32 for 4/2/1-byte dtypes.
    sub = max(8 * max(1, 4 // p_item), 8 * max(1, 4 // l_item))

    ncores = max(1, int(cores))

    # Rows per grid step: ~8 MiB of raw input per step (double-buffered plus
    # in-kernel f32 temporaries stays well inside the 48 MiB scoped limit).
    cols_vmem = _round_up(COLS, LANE)        # lane padding inside VMEM
    bytes_per_row = B * cols_vmem * (C * p_item + l_item)
    budget = 8 << 20
    rt_budget = max(sub, (budget // max(1, bytes_per_row)) // sub * sub)
    if block_rows is not None:
        rt = min(int(block_rows), ROWS)
        if rt < ROWS:
            assert rt > 0 and rt % sub == 0
    else:
        rt = min(rt_budget, _round_up(_cdiv(ROWS, ncores), sub))
    if rt >= ROWS:
        rt = ROWS                            # full-dim block is always legal

    nb = _cdiv(ROWS, rt)                     # row-blocks actually in range
    ncores = min(ncores, nb)
    steps = _cdiv(nb, ncores)
    needs_mask = (ncores * steps * rt != ROWS)

    def row_block(c, s):
        # Clamp so a core's trailing steps never request an out-of-range
        # block; their rows are zeroed by the in-kernel mask instead.
        return jnp.minimum(c * steps + s, nb - 1)

    kernel = functools.partial(
        _dice_sums_kernel, two_channel=(C == 2), rows_valid=ROWS,
        rt=rt, steps=steps, needs_mask=needs_mask)

    acc_spec = pl.BlockSpec((None, 1, COLS), lambda c, s: (c, 0, 0))
    out_shape = tuple(jax.ShapeDtypeStruct((ncores, 1, COLS), jnp.float32)
                      for _ in range(3))

    inter_p, m1_p, m2_p = pl.pallas_call(
        kernel,
        out_shape=out_shape,
        grid_spec=pltpu.PrefetchScalarGridSpec(
            num_scalar_prefetch=0,
            grid=(ncores, steps),
            in_specs=[
                pl.BlockSpec((B, C, rt, COLS),
                             lambda c, s: (0, 0, row_block(c, s), 0)),
                pl.BlockSpec((B, rt, COLS),
                             lambda c, s: (0, row_block(c, s), 0)),
            ],
            out_specs=[acc_spec, acc_spec, acc_spec],
        ),
        compiler_params=pltpu.CompilerParams(
            dimension_semantics=("parallel", "arbitrary"),
            vmem_limit_bytes=48 * 1024 * 1024),
    )(p, lab)

    inter_sum = jnp.sum(inter_p)
    m1_sum = jnp.sum(m1_p)
    m2_sum = jnp.sum(m2_p)

    smooth = 1e-07
    cls_score = 2.0 * (inter_sum + smooth) / (m1_sum + m2_sum + smooth)
    loss = (1.0 - cls_score) * weight         # (num_classes,)
    return jnp.mean(loss) if size_average else jnp.sum(loss)


def _reference(preds, labels, weight=None, num_classes=1, size_average=True):
    """Pure-JAX transcription of BinaryDiceLoss.forward."""
    B, C, H, W = preds.shape
    smooth = 1e-07
    preds = preds.astype(jnp.float32)
    labels = labels.astype(jnp.float32)
    if C == 2:
        p = jax.nn.softmax(preds, axis=1)[:, 0, :, :]
    else:
        p = preds[:, 0, :, :]
    m1 = p.reshape(B, -1)
    m2 = labels.reshape(B, -1)
    inter = (m1 * m2).sum()
    cls_score = 1.0 - 2.0 * (inter + smooth) / (m1.sum() + m2.sum() + smooth)
    if weight is None:
        weight = jnp.ones((num_classes,), jnp.float32)
    loss = cls_score * weight
    return jnp.mean(loss) if size_average else jnp.sum(loss)


if __name__ == "__main__":
    key = jax.random.PRNGKey(0)
    k = jax.random.split(key, 12)

    # Case 1: two-channel softmax path, spatial size divisible by 128.
    preds = jax.random.normal(k[0], (2, 2, 16, 16), jnp.float32)
    labels = jax.random.bernoulli(k[1], 0.5, (2, 16, 16)).astype(jnp.float32)
    out = jax.block_until_ready(binary_dice_loss(preds, labels))
    ref = _reference(preds, labels)
    assert jnp.allclose(out, ref, rtol=1e-4, atol=1e-5), (out, ref)

    # Case 2: single-channel path (no softmax), labels given as (B,1,H,W).
    preds1 = jax.nn.sigmoid(jax.random.normal(k[2], (2, 1, 16, 16), jnp.float32))
    labels1 = jax.random.bernoulli(k[3], 0.5, (2, 1, 16, 16)).astype(jnp.float32)
    out1 = jax.block_until_ready(binary_dice_loss(preds1, labels1))
    ref1 = _reference(preds1, labels1)
    assert jnp.allclose(out1, ref1, rtol=1e-4, atol=1e-5), (out1, ref1)

    # Case 3: spatial size not a multiple of 128 -> native (H, W) layout,
    # no padding, single full-dim block.
    preds2 = jax.random.normal(k[4], (2, 2, 10, 10), jnp.float32)
    labels2 = jax.random.bernoulli(k[5], 0.5, (2, 10, 10)).astype(jnp.float32)
    out2 = jax.block_until_ready(binary_dice_loss(preds2, labels2))
    ref2 = _reference(preds2, labels2)
    assert jnp.allclose(out2, ref2, rtol=1e-4, atol=1e-5), (out2, ref2)

    # Case 4: multi-step accumulation + 2-way parallel split + in-kernel row
    # mask (48*48/128 = 18 rows, 3 blocks of 8 split over 2 cores -> one
    # partial block and one clamped fully-masked block).
    preds3 = jax.random.normal(k[6], (2, 2, 48, 48), jnp.float32)
    labels3 = jax.random.bernoulli(k[7], 0.5, (2, 48, 48)).astype(jnp.float32)
    out3 = jax.block_until_ready(
        binary_dice_loss(preds3, labels3, block_rows=8, cores=2))
    ref3 = _reference(preds3, labels3)
    assert jnp.allclose(out3, ref3, rtol=1e-4, atol=1e-5), (out3, ref3)

    # Case 5: non-128-aligned spatial size with multiple row blocks + mask
    # on the ragged boundary block (no padding anywhere).
    preds4 = jax.random.normal(k[8], (2, 2, 20, 12), jnp.float32)
    labels4 = jax.random.bernoulli(k[9], 0.5, (2, 20, 12)).astype(jnp.float32)
    out4 = jax.block_until_ready(
        binary_dice_loss(preds4, labels4, block_rows=8))
    ref4 = _reference(preds4, labels4)
    assert jnp.allclose(out4, ref4, rtol=1e-4, atol=1e-5), (out4, ref4)

    # Case 6: narrow input dtypes (bf16 logits, int8 labels) upcast in-kernel.
    preds5 = jax.random.normal(k[10], (2, 2, 16, 16), jnp.float32).astype(jnp.bfloat16)
    labels5 = jax.random.bernoulli(k[11], 0.5, (2, 16, 16)).astype(jnp.int8)
    out5 = jax.block_until_ready(binary_dice_loss(preds5, labels5))
    ref5 = _reference(preds5.astype(jnp.float32), labels5.astype(jnp.float32))
    assert jnp.allclose(out5, ref5, rtol=1e-4, atol=1e-5), (out5, ref5)

    # Case 7: alpha / num_classes weighting path with size_average=False.
    out6 = jax.block_until_ready(
        binary_dice_loss(preds, labels, alpha=0.25, num_classes=2,
                         size_average=False))
    ref6 = _reference(preds, labels, weight=jnp.asarray([0.25, 0.75], jnp.float32),
                      num_classes=2, size_average=False)
    assert jnp.allclose(out6, ref6, rtol=1e-4, atol=1e-5), (out6, ref6)

    print("KERNEL_OK")
</pallas_src>

<mosaic_0001>
module attributes {stable_mosaic.version = 11 : i64} {
  func.func @_dice_sums_kernel(%arg0: i32, %arg1: i32, %arg2: memref<2x2x2x128xf32, #tpu.memory_space<vmem>>, %arg3: memref<2x2x128xf32, #tpu.memory_space<vmem>>, %arg4: memref<1x1x128xf32, #tpu.memory_space<vmem>>, %arg5: memref<1x1x128xf32, #tpu.memory_space<vmem>>, %arg6: memref<1x1x128xf32, #tpu.memory_space<vmem>>) attributes {dimension_semantics = [#tpu.dimension_semantics<parallel>, #tpu.dimension_semantics<arbitrary>], iteration_bounds = array<i64: 1, 1>, scalar_prefetch = 0 : i64, scratch_operands = 0 : i64, tpu.core_type = #tpu.core_type<tc>, window_params = [{transform_indices = @transform_0, window_bounds = array<i64: 2, 2, 2, 128>}, {transform_indices = @transform_1, window_bounds = array<i64: 2, 2, 128>}, {transform_indices = @transform_2, window_bounds = array<i64: 1, 1, 128>}, {transform_indices = @transform_3, window_bounds = array<i64: 1, 1, 128>}, {transform_indices = @transform_4, window_bounds = array<i64: 1, 1, 128>}]} {
    %c0_i32 = arith.constant 0 : i32
    %0 = arith.cmpi eq, %arg1, %c0_i32 : i32
    %1 = arith.extui %0 : i1 to i32
    %c0_i32_0 = arith.constant 0 : i32
    %2 = arith.cmpi ne, %1, %c0_i32_0 : i32
    scf.if %2 {
      %cst_35 = arith.constant 0.000000e+00 : f32
      %42 = vector.broadcast %cst_35 : f32 to vector<1x128xf32>
      %c0_36 = arith.constant 0 : index
      %c0_37 = arith.constant 0 : index
      %c0_38 = arith.constant 0 : index
      %43 = vector.load %arg4[%c0_36, %c0_37, %c0_38] : memref<1x1x128xf32, #tpu.memory_space<vmem>>, vector<1x1x128xf32>
      %44 = vector.shape_cast %43 : vector<1x1x128xf32> to vector<1x128xf32>
      %45 = vector.shape_cast %42 : vector<1x128xf32> to vector<1x1x128xf32>
      tpu.vector_store %arg4[%c0_36, %c0_37, %c0_38], %45 {strides = array<i32>} : memref<1x1x128xf32, #tpu.memory_space<vmem>>, vector<1x1x128xf32>,
      %cst_39 = arith.constant 0.000000e+00 : f32
      %46 = vector.broadcast %cst_39 : f32 to vector<1x128xf32>
      %c0_40 = arith.constant 0 : index
      %c0_41 = arith.constant 0 : index
      %c0_42 = arith.constant 0 : index
      %47 = vector.load %arg5[%c0_40, %c0_41, %c0_42] : memref<1x1x128xf32, #tpu.memory_space<vmem>>, vector<1x1x128xf32>
      %48 = vector.shape_cast %47 : vector<1x1x128xf32> to vector<1x128xf32>
      %49 = vector.shape_cast %46 : vector<1x128xf32> to vector<1x1x128xf32>
      tpu.vector_store %arg5[%c0_40, %c0_41, %c0_42], %49 {strides = array<i32>} : memref<1x1x128xf32, #tpu.memory_space<vmem>>, vector<1x1x128xf32>,
      %cst_43 = arith.constant 0.000000e+00 : f32
      %50 = vector.broadcast %cst_43 : f32 to vector<1x128xf32>
      %c0_44 = arith.constant 0 : index
      %c0_45 = arith.constant 0 : index
      %c0_46 = arith.constant 0 : index
      %51 = vector.load %arg6[%c0_44, %c0_45, %c0_46] : memref<1x1x128xf32, #tpu.memory_space<vmem>>, vector<1x1x128xf32>
      %52 = vector.shape_cast %51 : vector<1x1x128xf32> to vector<1x128xf32>
      %53 = vector.shape_cast %50 : vector<1x128xf32> to vector<1x1x128xf32>
      tpu.vector_store %arg6[%c0_44, %c0_45, %c0_46], %53 {strides = array<i32>} : memref<1x1x128xf32, #tpu.memory_space<vmem>>, vector<1x1x128xf32>,
    } else {
    }
    %c0 = arith.constant 0 : index
    %c0_1 = arith.constant 0 : index
    %c0_2 = arith.constant 0 : index
    %c0_3 = arith.constant 0 : index
    %3 = vector.load %arg2[%c0, %c0_1, %c0_2, %c0_3] : memref<2x2x2x128xf32, #tpu.memory_space<vmem>>, vector<2x1x2x128xf32>
    %4 = vector.shape_cast %3 : vector<2x1x2x128xf32> to vector<2x2x128xf32>
    %c0_4 = arith.constant 0 : index
    %c1 = arith.constant 1 : index
    %c0_5 = arith.constant 0 : index
    %c0_6 = arith.constant 0 : index
    %5 = vector.load %arg2[%c0_4, %c1, %c0_5, %c0_6] : memref<2x2x2x128xf32, #tpu.memory_space<vmem>>, vector<2x1x2x128xf32>
    %6 = vector.shape_cast %5 : vector<2x1x2x128xf32> to vector<2x2x128xf32>
    %7 = arith.subf %6, %4 : vector<2x2x128xf32>
    %8 = math.exp %7 : vector<2x2x128xf32>
    %cst = arith.constant 1.000000e+00 : f32
    %9 = vector.broadcast %cst : f32 to vector<2x2x128xf32>
    %10 = arith.addf %9, %8 : vector<2x2x128xf32>
    %cst_7 = arith.constant 1.000000e+00 : f32
    %11 = vector.broadcast %cst_7 : f32 to vector<2x2x128xf32>
    %12 = arith.divf %11, %10 : vector<2x2x128xf32>
    %c0_8 = arith.constant 0 : index
    %c0_9 = arith.constant 0 : index
    %c0_10 = arith.constant 0 : index
    %13 = vector.load %arg3[%c0_8, %c0_9, %c0_10] : memref<2x2x128xf32, #tpu.memory_space<vmem>>, vector<2x2x128xf32>
    %14 = arith.mulf %12, %13 : vector<2x2x128xf32>
    %cst_11 = arith.constant dense<0.000000e+00> : vector<2x128xf32>
    %15 = vector.multi_reduction <add>, %14, %cst_11 [0] : vector<2x2x128xf32> to vector<2x128xf32>
    %cst_12 = arith.constant dense<0.000000e+00> : vector<2x128xf32>
    %16 = vector.multi_reduction <add>, %12, %cst_12 [0] : vector<2x2x128xf32> to vector<2x128xf32>
    %cst_13 = arith.constant dense<0.000000e+00> : vector<2x128xf32>
    %17 = vector.multi_reduction <add>, %13, %cst_13 [0] : vector<2x2x128xf32> to vector<2x128xf32>
    %c0_14 = arith.constant 0 : index
    %c0_15 = arith.constant 0 : index
    %c0_16 = arith.constant 0 : index
    %18 = vector.load %arg4[%c0_14, %c0_15, %c0_16] : memref<1x1x128xf32, #tpu.memory_space<vmem>>, vector<1x1x128xf32>
    %19 = vector.shape_cast %18 : vector<1x1x128xf32> to vector<1x128xf32>
    %cst_17 = arith.constant dense<0.000000e+00> : vector<128xf32>
    %20 = vector.multi_reduction <add>, %15, %cst_17 [0] : vector<2x128xf32> to vector<128xf32>
    %21 = vector.shape_cast %20 : vector<128xf32> to vector<1x128xf32>
    %22 = arith.addf %19, %21 : vector<1x128xf32>
    %c0_18 = arith.constant 0 : index
    %c0_19 = arith.constant 0 : index
    %c0_20 = arith.constant 0 : index
    %23 = vector.load %arg4[%c0_18, %c0_19, %c0_20] : memref<1x1x128xf32, #tpu.memory_space<vmem>>, vector<1x1x128xf32>
    %24 = vector.shape_cast %23 : vector<1x1x128xf32> to vector<1x128xf32>
    %25 = vector.shape_cast %22 : vector<1x128xf32> to vector<1x1x128xf32>
    tpu.vector_store %arg4[%c0_18, %c0_19, %c0_20], %25 {strides = array<i32>} : memref<1x1x128xf32, #tpu.memory_space<vmem>>, vector<1x1x128xf32>,
    %c0_21 = arith.constant 0 : index
    %c0_22 = arith.constant 0 : index
    %c0_23 = arith.constant 0 : index
    %26 = vector.load %arg5[%c0_21, %c0_22, %c0_23] : memref<1x1x128xf32, #tpu.memory_space<vmem>>, vector<1x1x128xf32>
    %27 = vector.shape_cast %26 : vector<1x1x128xf32> to vector<1x128xf32>
    %cst_24 = arith.constant dense<0.000000e+00> : vector<128xf32>
    %28 = vector.multi_reduction <add>, %16, %cst_24 [0] : vector<2x128xf32> to vector<128xf32>
    %29 = vector.shape_cast %28 : vector<128xf32> to vector<1x128xf32>
    %30 = arith.addf %27, %29 : vector<1x128xf32>
    %c0_25 = arith.constant 0 : index
    %c0_26 = arith.constant 0 : index
    %c0_27 = arith.constant 0 : index
    %31 = vector.load %arg5[%c0_25, %c0_26, %c0_27] : memref<1x1x128xf32, #tpu.memory_space<vmem>>, vector<1x1x128xf32>
    %32 = vector.shape_cast %31 : vector<1x1x128xf32> to vector<1x128xf32>
    %33 = vector.shape_cast %30 : vector<1x128xf32> to vector<1x1x128xf32>
    tpu.vector_store %arg5[%c0_25, %c0_26, %c0_27], %33 {strides = array<i32>} : memref<1x1x128xf32, #tpu.memory_space<vmem>>, vector<1x1x128xf32>,
    %c0_28 = arith.constant 0 : index
    %c0_29 = arith.constant 0 : index
    %c0_30 = arith.constant 0 : index
    %34 = vector.load %arg6[%c0_28, %c0_29, %c0_30] : memref<1x1x128xf32, #tpu.memory_space<vmem>>, vector<1x1x128xf32>
    %35 = vector.shape_cast %34 : vector<1x1x128xf32> to vector<1x128xf32>
    %cst_31 = arith.constant dense<0.000000e+00> : vector<128xf32>
    %36 = vector.multi_reduction <add>, %17, %cst_31 [0] : vector<2x128xf32> to vector<128xf32>
    %37 = vector.shape_cast %36 : vector<128xf32> to vector<1x128xf32>
    %38 = arith.addf %35, %37 : vector<1x128xf32>
    %c0_32 = arith.constant 0 : index
    %c0_33 = arith.constant 0 : index
    %c0_34 = arith.constant 0 : index
    %39 = vector.load %arg6[%c0_32, %c0_33, %c0_34] : memref<1x1x128xf32, #tpu.memory_space<vmem>>, vector<1x1x128xf32>
    %40 = vector.shape_cast %39 : vector<1x1x128xf32> to vector<1x128xf32>
    %41 = vector.shape_cast %38 : vector<1x128xf32> to vector<1x1x128xf32>
    tpu.vector_store %arg6[%c0_32, %c0_33, %c0_34], %41 {strides = array<i32>} : memref<1x1x128xf32, #tpu.memory_space<vmem>>, vector<1x1x128xf32>,
    return
  }
  func.func @transform_0(%arg0: i32, %arg1: i32) -> (i32, i32, i32, i32) {
    %c1_i32 = arith.constant 1 : i32
    %0 = arith.muli %arg0, %c1_i32 : i32
    %1 = arith.addi %0, %arg1 : i32
    %c0_i32 = arith.constant 0 : i32
    %2 = arith.minsi %1, %c0_i32 : i32
    %c0_i32_0 = arith.constant 0 : i32
    %c0_i32_1 = arith.constant 0 : i32
    %c0_i32_2 = arith.constant 0 : i32
    %c0_i32_3 = arith.constant 0 : i32
    return %c0_i32_0, %c0_i32_1, %2, %c0_i32_2 : i32, i32, i32, i32
  }
  func.func @transform_1(%arg0: i32, %arg1: i32) -> (i32, i32, i32) {
    %c1_i32 = arith.constant 1 : i32
    %0 = arith.muli %arg0, %c1_i32 : i32
    %1 = arith.addi %0, %arg1 : i32
    %c0_i32 = arith.constant 0 : i32
    %2 = arith.minsi %1, %c0_i32 : i32
    %c0_i32_0 = arith.constant 0 : i32
    %c0_i32_1 = arith.constant 0 : i32
    %c0_i32_2 = arith.constant 0 : i32
    return %c0_i32_0, %2, %c0_i32_1 : i32, i32, i32
  }
  func.func @transform_2(%arg0: i32, %arg1: i32) -> (i32, i32, i32) {
    %c0_i32 = arith.constant 0 : i32
    %c0_i32_0 = arith.constant 0 : i32
    %c0_i32_1 = arith.constant 0 : i32
    return %arg0, %c0_i32, %c0_i32_0 : i32, i32, i32
  }
  func.func @transform_3(%arg0: i32, %arg1: i32) -> (i32, i32, i32) {
    %c0_i32 = arith.constant 0 : i32
    %c0_i32_0 = arith.constant 0 : i32
    %c0_i32_1 = arith.constant 0 : i32
    return %arg0, %c0_i32, %c0_i32_0 : i32, i32, i32
  }
  func.func @transform_4(%arg0: i32, %arg1: i32) -> (i32, i32, i32) {
    %c0_i32 = arith.constant 0 : i32
    %c0_i32_0 = arith.constant 0 : i32
    %c0_i32_1 = arith.constant 0 : i32
    return %arg0, %c0_i32, %c0_i32_0 : i32, i32, i32
  }
}

</mosaic_0001>

<llo_original>
// kernel: tpu_custom_call.1
$region0: #{tpu_custom_call.1}
  #allocation0 [shape = 'u32[]', space=smem, size = 0x4, offset = 0x4, fixed_abs, tag = 'smem constant byte address 0x4 - core index']
  #allocation1 [shape = 'u32[144,128]{1,0:T(1,128)}', space=vmem, size = 0x12000, scoped, tag = 'internal scratch']
  %s0 = inlined_call_operand.hbm [shape: f32[2,2,2,128], index: 0, kind: input, shape index: {}]
  %s1 = inlined_call_operand.hbm [shape: f32[2,2,128], index: 1, kind: input, shape index: {}]
  %s2 = inlined_call_operand.hbm [shape: f32[1,1,128], index: 2, kind: output, shape index: {0}]
  %s3 = inlined_call_operand.hbm [shape: f32[1,1,128], index: 3, kind: output, shape index: {1}]
  %s4 = inlined_call_operand.hbm [shape: f32[1,1,128], index: 4, kind: output, shape index: {2}]
  %5 = xla_tuple %s2, %s3, %s4
  %s6 = sld [smem:[#allocation0]]
  $region46: #{tpu_custom_call.1} parent=0
    _
  %s8 = ssub.s32 1, %s6
  %s9 = scalar_select 0, %s8, %s6
  $region1: #{tpu_custom_call.1} parent=0
    #allocation2 [shape = 'u8[4096]{0}', space=vmem, size = 0x1000, scoped, tag = 'input window, operand 0, single buffered']
    #allocation3 [shape = 's32[1]{0}', space=sflag, size = 0x4, scoped, tag = 'scoped memory for tpu_custom_call.1']
    #allocation4 [shape = 's32[1]{0}', space=sflag, size = 0x4, scoped, tag = 'scoped memory for tpu_custom_call.1']
    #allocation5 [shape = 'u8[2048]{0}', space=vmem, size = 0x800, scoped, tag = 'input window, operand 1, single buffered']
    #allocation6 [shape = 's32[1]{0}', space=sflag, size = 0x4, scoped, tag = 'scoped memory for tpu_custom_call.1']
    #allocation7 [shape = 'u8[512]{0}', space=vmem, size = 0x400, scoped, tag = 'output window, operand 0, single buffered']
    #allocation8 [shape = 'u8[512]{0}', space=vmem, size = 0x400, scoped, tag = 'output window, operand 1, single buffered']
    #allocation9 [shape = 's32[1]{0}', space=sflag, size = 0x4, scoped, tag = 'scoped memory for tpu_custom_call.1']
    #allocation10 [shape = 'u8[512]{0}', space=vmem, size = 0x400, scoped, tag = 'output window, operand 2, single buffered']
    %10 = vsyncpa [#allocation3], 0
    %11 = vsyncpa [#allocation6], 0
    %12 = vsyncpa [#allocation4], 0
    %13 = vsyncpa [#allocation9], 0
    // Predicated region
    $region2: #{tpu_custom_call.1} parent=1 // pred_check
      _
    $region3: #{tpu_custom_call.1} parent=1 // pred_check_branch
      %15 = sbr.rel (0) target = $region5
    $region4: #{tpu_custom_call.1} parent=1 // pred_region
      %s16 = sadd.s32 0, 0
      %p17 = scmp.lt.s32.totalorder %s16, 0
      %s18 = scalar_select %p17, %s16, 0
      %s20 = ssub.s32 128, 128
      %21 = vsyncadd [#allocation3], %s20
      %s22 = smul.addr %s18, 32
      %s23 = scalar_lea.hbm %s0, %s22
      %s24 = sshll.u32 [#allocation2], 4
      %s25 = int_to_ptr.vmem [resolvable:$true] %s24
      %30 = dma.hbm_to_vmem [thread:$0]  %s23, 128, %s25, [#allocation3], 32, 32, 2
    $region5: #{tpu_custom_call.1} parent=1 // pred_fallthru
      _
    // Predicated region
    $region6: #{tpu_custom_call.1} parent=1 // pred_check
      _
    $region7: #{tpu_custom_call.1} parent=1 // pred_check_branch
      %32 = sbr.rel (0) target = $region9
    $region8: #{tpu_custom_call.1} parent=1 // pred_region
      %s33 = sadd.s32 0, 0
      %p34 = scmp.lt.s32.totalorder %s33, 0
      %s35 = scalar_select %p34, %s33, 0
      %s37 = ssub.s32 64, 64
      %38 = vsyncadd [#allocation6], %s37
      %s39 = smul.addr %s35, 32
      %s40 = scalar_lea.hbm %s1, %s39
      %s41 = sshll.u32 [#allocation5], 4
      %s42 = int_to_ptr.vmem [resolvable:$true] %s41
      %47 = dma.hbm_to_vmem [thread:$0]  %s40, 64, %s42, [#allocation6], 32, 32, 2
    $region9: #{tpu_custom_call.1} parent=1 // pred_fallthru
      _
    // Predicated region
    $region10: #{tpu_custom_call.1} parent=1 // pred_check
      _
    $region11: #{tpu_custom_call.1} parent=1 // pred_check_branch
      %49 = sbr.rel (0) target = $region13
    $region12: #{tpu_custom_call.1} parent=1 // pred_region
      %50 = dma.done [#allocation3], 128
    $region13: #{tpu_custom_call.1} parent=1 // pred_fallthru
      _
    // Predicated region
    $region14: #{tpu_custom_call.1} parent=1 // pred_check
      _
    $region15: #{tpu_custom_call.1} parent=1 // pred_check_branch
      %52 = sbr.rel (0) target = $region17
    $region16: #{tpu_custom_call.1} parent=1 // pred_region
      %53 = dma.done [#allocation6], 64
    $region17: #{tpu_custom_call.1} parent=1 // pred_fallthru
      _
    %s54 = sadd.s32 0, 0
    %p55 = scmp.lt.s32.totalorder %s54, 0
    %s56 = scalar_select %p55, %s54, 0
    %s57 = sadd.s32 0, 0
    %p58 = scmp.lt.s32.totalorder %s57, 0
    %s59 = scalar_select %p58, %s57, 0
    %p60 = scmp.eq.s32.totalorder 0, 0
    // Predicated region
    $region18: #{tpu_custom_call.1} parent=1 // pred_check
      %p61 = pneg %p60
    $region19: #{tpu_custom_call.1} parent=1 // pred_check_branch
      %63 = sbr.rel (%p61) target = $region21
    $region20: #{tpu_custom_call.1} parent=1 // pred_region
      %64 = vst [vmem:[#allocation7] sm:$0x1] 0.0
      %65 = vst [vmem:[#allocation8] sm:$0x1] 0.0
      %66 = vst [vmem:[#allocation10] sm:$0x1] 0.0
    $region21: #{tpu_custom_call.1} parent=1 // pred_fallthru
      _
    %v67 = vld [vmem:[#allocation2] sm:$0x3]
    %v68 = vld [vmem:[#allocation2 + $0x4] sm:$0x3]
    %s69 = scalar_lea.vmem [#allocation2], 2
    %v70 = vld [vmem:[%s69] sm:$0x3]
    %v71 = vld [vmem:[%s69 + $0x4] sm:$0x3]
    %v72 = vsub.f32 %v70, %v67
    %v73 = vsub.f32 %v71, %v68
    %v74 = vmul.f32 %v72, 1.442695
    %v75 = vpow.pop %v74
    %v76 = vmul.f32 %v73, 1.442695
    %v77 = vpow.pop %v76
    %v78 = vadd.f32 %v75, 1.0
    %v79 = vadd.f32 %v77, 1.0
    %v80 = vrcp.pop %v78
    %v81 = vmul.f32 1.0, %v80
    %v82 = vrcp.pop %v79
    %v83 = vmul.f32 1.0, %v82
    %v84 = vld [vmem:[#allocation5] sm:$0x3]
    %v85 = vld [vmem:[#allocation5 + $0x2] sm:$0x3]
    %v86 = vmul.f32 %v81, %v84
    %v87 = vmul.f32 %v83, %v85
    %vm88 = vcmask 1041408
    %v89 = vsel %vm88, %v86, 0.0
    %v90 = vsel %vm88, %v87, 0.0
    %v91 = vadd.f32 %v89, %v90
    %v92 = vsel %vm88, %v81, 0.0
    %v93 = vsel %vm88, %v83, 0.0
    %v94 = vadd.f32 %v92, %v93
    %v95 = vsel %vm88, %v84, 0.0
    %v96 = vsel %vm88, %v85, 0.0
    %v97 = vadd.f32 %v95, %v96
    %v98 = vld [vmem:[#allocation7] sm:$0x1]
    %v99 = vsel %vm88, %v91, 0.0
    %v100 = vrot.slane %v99, 4
    %v101 = vadd.f32 %v99, %v100
    %v102 = vrot.slane %v101, 2
    %v103 = vadd.f32 %v101, %v102
    %v104 = vrot.slane %v103, 1
    %v105 = vadd.f32 %v103, %v104
    %v106 = vadd.f32 %v98, %v105
    %107 = vst [vmem:[#allocation7] sm:$0x1] %v106
    %v108 = vld [vmem:[#allocation8] sm:$0x1]
    %v109 = vsel %vm88, %v94, 0.0
    %v110 = vrot.slane %v109, 4
    %v111 = vadd.f32 %v109, %v110
    %v112 = vrot.slane %v111, 2
    %v113 = vadd.f32 %v111, %v112
    %v114 = vrot.slane %v113, 1
    %v115 = vadd.f32 %v113, %v114
    %v116 = vadd.f32 %v108, %v115
    %117 = vst [vmem:[#allocation8] sm:$0x1] %v116
    %v118 = vld [vmem:[#allocation10] sm:$0x1]
    %v119 = vsel %vm88, %v97, 0.0
    %v120 = vrot.slane %v119, 4
    %v121 = vadd.f32 %v119, %v120
    %v122 = vrot.slane %v121, 2
    %v123 = vadd.f32 %v121, %v122
    %v124 = vrot.slane %v123, 1
    %v125 = vadd.f32 %v123, %v124
    %v126 = vadd.f32 %v118, %v125
    %127 = vst [vmem:[#allocation10] sm:$0x1] %v126
    // Predicated region
    $region22: #{tpu_custom_call.1} parent=1 // pred_check
      _
    $region23: #{tpu_custom_call.1} parent=1 // pred_check_branch
      %129 = sbr.rel (0) target = $region25
    $region24: #{tpu_custom_call.1} parent=1 // pred_region
      %s131 = ssub.s32 16, 16
      %132 = vsyncadd [#allocation4], %s131
      %s134 = sshll.u32 [#allocation7], 4
      %s135 = int_to_ptr.vmem [resolvable:$true] %s134
      %137 = dma.vmem_to_hbm [thread:$0]  %s135, 16, %s2, [#allocation4]
    $region25: #{tpu_custom_call.1} parent=1 // pred_fallthru
      _
    // Predicated region
    $region26: #{tpu_custom_call.1} parent=1 // pred_check
      _
    $region27: #{tpu_custom_call.1} parent=1 // pred_check_branch
      %139 = sbr.rel (0) target = $region29
    $region28: #{tpu_custom_call.1} parent=1 // pred_region
      %s141 = ssub.s32 16, 16
      %142 = vsyncadd [#allocation9], %s141
      %s144 = sshll.u32 [#allocation8], 4
      %s145 = int_to_ptr.vmem [resolvable:$true] %s144
      %147 = dma.vmem_to_hbm [thread:$0]  %s145, 16, %s3, [#allocation9]
    $region29: #{tpu_custom_call.1} parent=1 // pred_fallthru
      _
    // Predicated region
    $region30: #{tpu_custom_call.1} parent=1 // pred_check
      _
    $region31: #{tpu_custom_call.1} parent=1 // pred_check_branch
      %149 = sbr.rel (0) target = $region33
    $region32: #{tpu_custom_call.1} parent=1 // pred_region
      %s151 = ssub.s32 16, 16
      %152 = vsyncadd [#allocation9], %s151
      %s154 = sshll.u32 [#allocation10], 4
      %s155 = int_to_ptr.vmem [resolvable:$true] %s154
      %157 = dma.vmem_to_hbm [thread:$0]  %s155, 16, %s4, [#allocation9]
    $region33: #{tpu_custom_call.1} parent=1 // pred_fallthru
      _
    // Predicated region
    $region34: #{tpu_custom_call.1} parent=1 // pred_check
      _
    $region35: #{tpu_custom_call.1} parent=1 // pred_check_branch
      %159 = sbr.rel (0) target = $region37
    $region36: #{tpu_custom_call.1} parent=1 // pred_region
      %160 = dma.done [#allocation4], 16
    $region37: #{tpu_custom_call.1} parent=1 // pred_fallthru
      _
    // Predicated region
    $region38: #{tpu_custom_call.1} parent=1 // pred_check
      _
    $region39: #{tpu_custom_call.1} parent=1 // pred_check_branch
      %162 = sbr.rel (0) target = $region41
    $region40: #{tpu_custom_call.1} parent=1 // pred_region
      %163 = dma.done [#allocation9], 16
    $region41: #{tpu_custom_call.1} parent=1 // pred_fallthru
      _
    // Predicated region
    $region42: #{tpu_custom_call.1} parent=1 // pred_check
      _
    $region43: #{tpu_custom_call.1} parent=1 // pred_check_branch
      %165 = sbr.rel (0) target = $region45
    $region44: #{tpu_custom_call.1} parent=1 // pred_region
      %166 = dma.done [#allocation9], 16
    $region45: #{tpu_custom_call.1} parent=1 // pred_fallthru
      _
    %167 = vsyncpa [#allocation3], 1
    %168 = vsyncpa [#allocation6], 1
    %169 = vsyncpa [#allocation4], 1
    %170 = vsyncpa [#allocation9], 1

</llo_original>
